<compile_context>
chip_gen: v5e
topology: v5e:2x2
jax: 0.10.0
libtpu: 0.0.40
codegen_flags: <defaults>
</compile_context>

<pallas_src>
import functools

import jax
import jax.numpy as jnp
import numpy as np
from jax.experimental import pallas as pl
from jax.experimental.pallas import tpu as pltpu

_MIB = 1024 * 1024

# gen -> (per-buffer x-tile byte budget, default vmem_limit, vmem_limit cap, cores/device)
_GEN_BUDGETS = {
    "v5e": (8 * _MIB, 40 * _MIB, 100 * _MIB, 1),
    "v5p": (16 * _MIB, 64 * _MIB, 100 * _MIB, 2),
    "v4": (16 * _MIB, 64 * _MIB, 100 * _MIB, 2),
    "v6e": (16 * _MIB, 64 * _MIB, 100 * _MIB, 1),
    "v7x": (12 * _MIB, 48 * _MIB, 56 * _MIB, 2),   # 64 MiB physical VMEM per TC
    "unknown": (8 * _MIB, 40 * _MIB, 48 * _MIB, 1),
}


def _tpu_generation():
    try:
        kind = jax.devices()[0].device_kind.lower()
    except Exception:
        return "unknown"
    if "7" in kind:
        return "v7x"
    if "v6" in kind:
        return "v6e"
    if "v5" in kind:
        return "v5e" if ("lite" in kind or "5e" in kind) else "v5p"
    if "v4" in kind:
        return "v4"
    return "unknown"


def _round_up(a, b):
    return -(-a // b) * b


def _padded_tile_bytes(B, C, lanes, dtype):
    itemsize = np.dtype(dtype).itemsize
    pad_to = max(8, 32 // itemsize)              # sublane packing: f32->8, bf16->16, int8->32
    return B * _round_up(C, pad_to) * _round_up(lanes, 128) * itemsize


def _choose_tile_p(B, C, P, dtype, max_tile_bytes):
    """Largest lane tile (multiple of 128, or full P) whose padded (B,C,tile_p) slab fits."""
    itemsize = np.dtype(dtype).itemsize
    pad_to = max(8, 32 // itemsize)
    bytes_per_lane = B * _round_up(C, pad_to) * itemsize      # includes sublane padding
    p128 = _round_up(P, 128)
    if p128 * bytes_per_lane <= max_tile_bytes:
        return P                                   # single-block fast path (full-dim block)
    cap = max(128, (max_tile_bytes // bytes_per_lane) // 128 * 128)
    tile_p = int(min(cap, p128))
    # Keep each (b,c) row of the strided x DMA >= 2 KiB contiguous (v5e DMA efficiency).
    if p128 >= 512 and tile_p < 512 and 512 * bytes_per_lane <= 2 * max_tile_bytes:
        tile_p = 512
    return tile_p


def _attention_stream_kernel(x_ref, w1_ref, t_ref, s_ref, *,
                             steps_per_split, tile_p, total_p, needs_mask):
    c = pl.program_id(0)       # split index (parallel: both TensorCores on multi-core chips)
    i = pl.program_id(1)       # tile index within the split (reduction over P)

    @pl.when(i == 0)
    def _():
        t_ref[...] = jnp.zeros_like(t_ref)
        s_ref[...] = jnp.zeros_like(s_ref)

    x = x_ref[...].astype(jnp.float32)                        # (B, C, tP), upcast from native dtype

    if needs_mask:
        start = (c * steps_per_split + i) * tile_p
        lane = jax.lax.broadcasted_iota(jnp.int32, (1, tile_p), 1)
        valid = (lane + start) < total_p                      # (1, tP)
        x = jnp.where(valid[:, None, :], x, 0.0)              # zero padded / out-of-range lanes

    # ---- conv1 logits (bias dropped: batch-softmax is shift-invariant when ch_1 == 1)
    a = jnp.sum(x * w1_ref[...][None, :, :], axis=1)          # (B, tP)  sublane reduce

    # ---- nn.Softmax() on a 3-D tensor => implicit dim=0 => softmax over BATCH, per position.
    m = jnp.max(a, axis=0, keepdims=True)                     # (1, tP)
    e = jnp.exp(a - m)                                        # (B, tP)  EUP
    denom = jnp.sum(e, axis=0, keepdims=True)                 # (1, tP)
    r = pl.reciprocal(denom, approx=True)                     # EUP approx ...
    r = r * (2.0 - denom * r)                                 # ... + one Newton step (~f32 exact)
    s = e * r                                                 # (B, tP)
    if needs_mask:
        s = jnp.where(valid, s, 0.0)                          # masked positions carry no mass

    # ---- per-split partial accumulators live directly in the resident output blocks
    t_ref[...] += jnp.sum(x * s[:, None, :], axis=2)[None]    # (1, B, C)  lane reduce
    s_ref[...] += jnp.sum(s, axis=1, keepdims=True)[None]     # (1, B, 1)  lane reduce


def _attention_epilogue_kernel(t_ref, s_ref, w2_ref, b2_ref, w3_ref, b3_ref, o_ref):
    t = jnp.sum(t_ref[...], axis=0)                           # (B, C)  combine split partials
    mass = jnp.sum(s_ref[...], axis=0)                        # (B, 1)
    att = jnp.dot(t, w2_ref[...], preferred_element_type=jnp.float32) + mass * b2_ref[...]
    y = jnp.dot(att, w3_ref[...], preferred_element_type=jnp.float32) + b3_ref[...]
    o_ref[...] = jax.nn.sigmoid(y)


def attention_block(x_nchw, params, tile_p=None, num_splits=None, max_tile_bytes=None):
    """x_nchw: (B, C_in, H, W). Returns (B, C_in, 1, 1) float32, matching the PyTorch module."""
    w1, b1, w2, b2, w3, b3 = params
    # ch_1 must be 1 for the PyTorch global_pool=False .view() to be valid; dropping b1 is
    # only correct in that case (uniform logit shift, batch-softmax invariant).
    assert w1.shape[1] == 1, "global_pool=False path requires ch_1 == 1"
    del b1

    B, C, H, W = x_nchw.shape
    P = H * W
    ch2 = w2.shape[1]

    gen = _tpu_generation()
    tile_budget, vmem_default, vmem_cap, cores = _GEN_BUDGETS.get(gen, _GEN_BUDGETS["unknown"])
    if max_tile_bytes is None:
        max_tile_bytes = tile_budget

    # Free reshape only — no transpose / dtype pass over HBM; x streams in its native dtype.
    x = x_nchw.reshape(B, C, P)

    if tile_p is None:
        tile_p = _choose_tile_p(B, C, P, x.dtype, max_tile_bytes)
    assert tile_p == P or tile_p % 128 == 0, (tile_p, P)

    steps_total = -(-P // tile_p)
    if num_splits is None:
        num_splits = 2 if (cores >= 2 and steps_total >= 2) else 1
    num_splits = max(1, min(int(num_splits), steps_total))
    steps_per_split = -(-steps_total // num_splits)
    needs_mask = (num_splits * steps_per_split * tile_p != P)

    if num_splits * steps_per_split > steps_total:
        # Trailing grid slots fall past the end of P: clamp their block index (the duplicated
        # read is fully lane-masked in the kernel, so it contributes nothing).
        x_map = lambda c, i: (0, 0, jnp.minimum(c * steps_per_split + i, steps_total - 1))
    else:
        x_map = lambda c, i: (0, 0, c * steps_per_split + i)

    tile_bytes = _padded_tile_bytes(B, C, tile_p, x.dtype)     # sublane-padding-aware
    vmem_limit = int(min(vmem_cap, max(vmem_default, 2 * tile_bytes + 4 * _MIB)))

    kernel = functools.partial(
        _attention_stream_kernel,
        steps_per_split=steps_per_split, tile_p=tile_p, total_p=P, needs_mask=needs_mask)

    grid_spec = pltpu.PrefetchScalarGridSpec(
        num_scalar_prefetch=0,
        grid=(num_splits, steps_per_split),
        in_specs=[
            pl.BlockSpec((B, C, tile_p), x_map),                 # x, tiled over P
            pl.BlockSpec((C, 1), lambda c, i: (0, 0)),           # w1 (constant block, DMA'd once)
        ],
        out_specs=[
            pl.BlockSpec((1, B, C), lambda c, i: (c, 0, 0)),     # per-split t partial (resident)
            pl.BlockSpec((1, B, 1), lambda c, i: (c, 0, 0)),     # per-split softmax-mass partial
        ],
    )

    itemsize = np.dtype(x.dtype).itemsize
    cost = pl.CostEstimate(
        flops=int(6 * B * C * P + 10 * B * P),
        transcendentals=int(B * P + P),
        bytes_accessed=int(itemsize * B * C * P + 4 * (C + 2 * num_splits * B * (C + 1))),
    )

    t_part, s_part = pl.pallas_call(
        kernel,
        out_shape=(jax.ShapeDtypeStruct((num_splits, B, C), jnp.float32),
                   jax.ShapeDtypeStruct((num_splits, B, 1), jnp.float32)),
        grid_spec=grid_spec,
        compiler_params=pltpu.CompilerParams(
            # Leading axis: independent halves of the P reduction (sharded across TensorCores
            # on v7x-class chips); trailing axis: the in-split reduction over P tiles.
            dimension_semantics=("parallel", "arbitrary"),
            vmem_limit_bytes=vmem_limit,
        ),
        cost_estimate=cost,
    )(x, w1.astype(jnp.float32))

    # Tiny epilogue on (B, C)-sized data: combine split partials, conv2 (hoisted bias),
    # conv3, sigmoid.  Everything fits trivially in VMEM; one grid step.
    epi_spec = pltpu.PrefetchScalarGridSpec(
        num_scalar_prefetch=0,
        grid=(1,),
        in_specs=[
            pl.BlockSpec((num_splits, B, C), lambda i: (0, 0, 0)),
            pl.BlockSpec((num_splits, B, 1), lambda i: (0, 0, 0)),
            pl.BlockSpec((C, ch2), lambda i: (0, 0)),
            pl.BlockSpec((1, ch2), lambda i: (0, 0)),
            pl.BlockSpec((ch2, C), lambda i: (0, 0)),
            pl.BlockSpec((1, C), lambda i: (0, 0)),
        ],
        out_specs=pl.BlockSpec((B, C), lambda i: (0, 0)),
    )
    out = pl.pallas_call(
        _attention_epilogue_kernel,
        out_shape=jax.ShapeDtypeStruct((B, C), jnp.float32),
        grid_spec=epi_spec,
        compiler_params=pltpu.CompilerParams(dimension_semantics=("arbitrary",)),
    )(t_part, s_part, w2.astype(jnp.float32), b2.astype(jnp.float32),
      w3.astype(jnp.float32), b3.astype(jnp.float32))

    return out.reshape(B, C, 1, 1)


def reference(x_nchw, params):
    """Pure-JAX mirror of the PyTorch forward (global_pool=False, ch_1 = 1)."""
    w1, b1, w2, b2, w3, b3 = params
    B, C, H, W = x_nchw.shape
    ch2 = w2.shape[1]
    c1 = jnp.einsum('bchw,co->bohw', x_nchw, w1) + b1[0, :, None, None]  # (B,1,H,W)
    c2 = jnp.einsum('bchw,ck->bkhw', x_nchw, w2) + b2[0, :, None, None]  # (B,ch2,H,W)
    c1 = c1.reshape(B, H * W, 1)
    c2 = c2.reshape(B, ch2, H * W)
    c1 = jax.nn.softmax(c1, axis=0)        # nn.Softmax() implicit dim=0 for 3-D input
    outs = []
    for b in range(B):
        outs.append(jnp.tensordot(c1[b], c2[b], axes=([0], [1])))        # (1, ch2)
    out = jnp.stack(outs, axis=0)                                        # (B,1,ch2)
    out = out.reshape(B, ch2, 1, 1)
    out = jnp.einsum('bkhw,kc->bchw', out, w3) + b3[0, :, None, None]    # (B,C,1,1)
    return jax.nn.sigmoid(out)


def _make_params(key, C_in, ch_1, ch_2):
    ks = jax.random.split(key, 6)
    w1 = jax.random.normal(ks[0], (C_in, ch_1), dtype=jnp.float32) * 0.5
    b1 = jax.random.normal(ks[1], (1, ch_1), dtype=jnp.float32) * 0.1
    w2 = jax.random.normal(ks[2], (C_in, ch_2), dtype=jnp.float32) * 0.5
    b2 = jax.random.normal(ks[3], (1, ch_2), dtype=jnp.float32) * 0.1
    w3 = jax.random.normal(ks[4], (ch_2, C_in), dtype=jnp.float32) * 0.5
    b3 = jax.random.normal(ks[5], (1, C_in), dtype=jnp.float32) * 0.1
    return (w1, b1, w2, b2, w3, b3)


if __name__ == "__main__":
    key = jax.random.PRNGKey(0)
    B, C_in, ch_1, ch_2 = 2, 4, 1, 8
    kx1, kx2, kx3, kp = jax.random.split(key, 4)
    params = _make_params(kp, C_in, ch_1, ch_2)

    def check(x, y, tol=1e-4):
        y_ref = reference(x.astype(jnp.float32), params)
        assert y.shape == (x.shape[0], C_in, 1, 1), y.shape
        err = float(np.max(np.abs(np.asarray(y) - np.asarray(y_ref))))
        assert np.allclose(np.asarray(y), np.asarray(y_ref), rtol=tol, atol=tol), err

    x1 = jax.random.normal(kx1, (B, C_in, 16, 16), dtype=jnp.float32)   # P = 256
    x2 = jax.random.normal(kx2, (B, C_in, 15, 15), dtype=jnp.float32)   # P = 225 (ragged)
    x3 = jax.random.normal(kx3, (B, C_in, 16, 24), dtype=jnp.float32)   # P = 384 (odd tile count)

    # 1) auto tiling: single-block fast path, grid (1, 1)
    check(x1, jax.block_until_ready(attention_block(x1, params)))
    # 2) multi-tile accumulation on one split, grid (1, 2)
    check(x1, jax.block_until_ready(attention_block(x1, params, tile_p=128, num_splits=1)))
    # 3) P reduction split in two (v7x dual-TensorCore layout): partials + epilogue combine
    check(x1, jax.block_until_ready(attention_block(x1, params, tile_p=128, num_splits=2)))
    # 4) ragged P: cdiv grid + last-tile lane masking, grid (1, 2); and full-block P % 128 != 0
    check(x2, jax.block_until_ready(attention_block(x2, params, tile_p=128, num_splits=1)))
    check(x2, jax.block_until_ready(attention_block(x2, params)))
    # 5) odd tile count with 2 splits: clamped fully-masked dummy tile, grid (2, 2)
    check(x3, jax.block_until_ready(attention_block(x3, params, tile_p=128, num_splits=2)))
    # 6) bf16 streaming (native-dtype HBM bytes, f32 accumulation in-kernel)
    xb = x1.astype(jnp.bfloat16)
    check(xb, jax.block_until_ready(attention_block(xb, params)), tol=2e-4)

    print("KERNEL_OK")
</pallas_src>

<mosaic_0001>
module attributes {stable_mosaic.version = 11 : i64} {
  func.func @_attention_stream_kernel(%arg0: i32, %arg1: i32, %arg2: memref<2x4x256xf32, #tpu.memory_space<vmem>>, %arg3: memref<4x1xf32, #tpu.memory_space<vmem>>, %arg4: memref<1x2x4xf32, #tpu.memory_space<vmem>>, %arg5: memref<1x2x1xf32, #tpu.memory_space<vmem>>) attributes {dimension_semantics = [#tpu.dimension_semantics<parallel>, #tpu.dimension_semantics<arbitrary>], iteration_bounds = array<i64: 1, 1>, scalar_prefetch = 0 : i64, scratch_operands = 0 : i64, tpu.core_type = #tpu.core_type<tc>, window_params = [{transform_indices = @transform_0, window_bounds = array<i64: 2, 4, 256>}, {pipeline_mode = #tpu.pipeline_mode<synchronous>, transform_indices = @transform_1, window_bounds = array<i64: 4, 1>}, {transform_indices = @transform_2, window_bounds = array<i64: 1, 2, 4>}, {transform_indices = @transform_3, window_bounds = array<i64: 1, 2, 1>}]} {
    %c0_i32 = arith.constant 0 : i32
    %0 = arith.cmpi eq, %arg1, %c0_i32 : i32
    %1 = arith.extui %0 : i1 to i32
    %c0_i32_0 = arith.constant 0 : i32
    %2 = arith.cmpi ne, %1, %c0_i32_0 : i32
    scf.if %2 {
      %cst_22 = arith.constant 0.000000e+00 : f32
      %37 = vector.broadcast %cst_22 : f32 to vector<1x2x4xf32>
      %c0_23 = arith.constant 0 : index
      %c0_24 = arith.constant 0 : index
      %c0_25 = arith.constant 0 : index
      %38 = vector.load %arg4[%c0_23, %c0_24, %c0_25] : memref<1x2x4xf32, #tpu.memory_space<vmem>>, vector<1x2x4xf32>
      tpu.vector_store %arg4[%c0_23, %c0_24, %c0_25], %37 {strides = array<i32>} : memref<1x2x4xf32, #tpu.memory_space<vmem>>, vector<1x2x4xf32>,
      %cst_26 = arith.constant 0.000000e+00 : f32
      %39 = vector.broadcast %cst_26 : f32 to vector<1x2x1xf32>
      %c0_27 = arith.constant 0 : index
      %c0_28 = arith.constant 0 : index
      %c0_29 = arith.constant 0 : index
      %40 = vector.load %arg5[%c0_27, %c0_28, %c0_29] : memref<1x2x1xf32, #tpu.memory_space<vmem>>, vector<1x2x1xf32>
      tpu.vector_store %arg5[%c0_27, %c0_28, %c0_29], %39 {strides = array<i32>} : memref<1x2x1xf32, #tpu.memory_space<vmem>>, vector<1x2x1xf32>,
    } else {
    }
    %c0 = arith.constant 0 : index
    %c0_1 = arith.constant 0 : index
    %c0_2 = arith.constant 0 : index
    %3 = vector.load %arg2[%c0, %c0_1, %c0_2] : memref<2x4x256xf32, #tpu.memory_space<vmem>>, vector<2x4x256xf32>
    %c0_3 = arith.constant 0 : index
    %c0_4 = arith.constant 0 : index
    %4 = vector.load %arg3[%c0_3, %c0_4] : memref<4x1xf32, #tpu.memory_space<vmem>>, vector<4x1xf32>
    %5 = vector.shape_cast %4 : vector<4x1xf32> to vector<1x4x1xf32>
    %6 = vector.broadcast %5 : vector<1x4x1xf32> to vector<2x4x256xf32>
    %7 = arith.mulf %3, %6 : vector<2x4x256xf32>
    %cst = arith.constant dense<0.000000e+00> : vector<2x256xf32>
    %8 = vector.multi_reduction <add>, %7, %cst [1] : vector<2x4x256xf32> to vector<2x256xf32>
    %cst_5 = arith.constant dense<0xFF800000> : vector<256xf32>
    %9 = vector.multi_reduction <maximumf>, %8, %cst_5 [0] : vector<2x256xf32> to vector<256xf32>
    %10 = vector.shape_cast %9 : vector<256xf32> to vector<1x256xf32>
    %11 = vector.broadcast %10 : vector<1x256xf32> to vector<2x256xf32>
    %12 = arith.subf %8, %11 : vector<2x256xf32>
    %13 = math.exp %12 : vector<2x256xf32>
    %cst_6 = arith.constant dense<0.000000e+00> : vector<256xf32>
    %14 = vector.multi_reduction <add>, %13, %cst_6 [0] : vector<2x256xf32> to vector<256xf32>
    %15 = vector.shape_cast %14 : vector<256xf32> to vector<1x256xf32>
    %16 = tpu.reciprocal %15 {approx = true} : vector<1x256xf32> -> vector<1x256xf32>
    %17 = arith.mulf %15, %16 : vector<1x256xf32>
    %cst_7 = arith.constant 2.000000e+00 : f32
    %18 = vector.broadcast %cst_7 : f32 to vector<1x256xf32>
    %19 = arith.subf %18, %17 : vector<1x256xf32>
    %20 = arith.mulf %16, %19 : vector<1x256xf32>
    %21 = vector.broadcast %20 : vector<1x256xf32> to vector<2x256xf32>
    %22 = arith.mulf %13, %21 : vector<2x256xf32>
    %c0_8 = arith.constant 0 : index
    %c0_9 = arith.constant 0 : index
    %c0_10 = arith.constant 0 : index
    %23 = vector.load %arg4[%c0_8, %c0_9, %c0_10] : memref<1x2x4xf32, #tpu.memory_space<vmem>>, vector<1x2x4xf32>
    %24 = vector.shape_cast %22 : vector<2x256xf32> to vector<2x1x256xf32>
    %25 = vector.broadcast %24 : vector<2x1x256xf32> to vector<2x4x256xf32>
    %26 = arith.mulf %3, %25 : vector<2x4x256xf32>
    %cst_11 = arith.constant dense<0.000000e+00> : vector<2x4xf32>
    %27 = vector.multi_reduction <add>, %26, %cst_11 [2] : vector<2x4x256xf32> to vector<2x4xf32>
    %28 = vector.shape_cast %27 : vector<2x4xf32> to vector<1x2x4xf32>
    %29 = arith.addf %23, %28 : vector<1x2x4xf32>
    %c0_12 = arith.constant 0 : index
    %c0_13 = arith.constant 0 : index
    %c0_14 = arith.constant 0 : index
    %30 = vector.load %arg4[%c0_12, %c0_13, %c0_14] : memref<1x2x4xf32, #tpu.memory_space<vmem>>, vector<1x2x4xf32>
    tpu.vector_store %arg4[%c0_12, %c0_13, %c0_14], %29 {strides = array<i32>} : memref<1x2x4xf32, #tpu.memory_space<vmem>>, vector<1x2x4xf32>,
    %c0_15 = arith.constant 0 : index
    %c0_16 = arith.constant 0 : index
    %c0_17 = arith.constant 0 : index
    %31 = vector.load %arg5[%c0_15, %c0_16, %c0_17] : memref<1x2x1xf32, #tpu.memory_space<vmem>>, vector<1x2x1xf32>
    %cst_18 = arith.constant dense<0.000000e+00> : vector<2xf32>
    %32 = vector.multi_reduction <add>, %22, %cst_18 [1] : vector<2x256xf32> to vector<2xf32>
    %33 = vector.shape_cast %32 : vector<2xf32> to vector<2x1xf32>
    %34 = vector.shape_cast %33 : vector<2x1xf32> to vector<1x2x1xf32>
    %35 = arith.addf %31, %34 : vector<1x2x1xf32>
    %c0_19 = arith.constant 0 : index
    %c0_20 = arith.constant 0 : index
    %c0_21 = arith.constant 0 : index
    %36 = vector.load %arg5[%c0_19, %c0_20, %c0_21] : memref<1x2x1xf32, #tpu.memory_space<vmem>>, vector<1x2x1xf32>
    tpu.vector_store %arg5[%c0_19, %c0_20, %c0_21], %35 {strides = array<i32>} : memref<1x2x1xf32, #tpu.memory_space<vmem>>, vector<1x2x1xf32>,
    return
  }
  func.func @transform_0(%arg0: i32, %arg1: i32) -> (i32, i32, i32) {
    %c1_i32 = arith.constant 1 : i32
    %0 = arith.muli %arg0, %c1_i32 : i32
    %1 = arith.addi %0, %arg1 : i32
    %c0_i32 = arith.constant 0 : i32
    %c0_i32_0 = arith.constant 0 : i32
    %c0_i32_1 = arith.constant 0 : i32
    return %c0_i32, %c0_i32_0, %1 : i32, i32, i32
  }
  func.func @transform_1(%arg0: i32, %arg1: i32) -> (i32, i32) {
    %c0_i32 = arith.constant 0 : i32
    %c0_i32_0 = arith.constant 0 : i32
    %c0_i32_1 = arith.constant 0 : i32
    return %c0_i32, %c0_i32_0 : i32, i32
  }
  func.func @transform_2(%arg0: i32, %arg1: i32) -> (i32, i32, i32) {
    %c0_i32 = arith.constant 0 : i32
    %c0_i32_0 = arith.constant 0 : i32
    %c0_i32_1 = arith.constant 0 : i32
    return %arg0, %c0_i32, %c0_i32_0 : i32, i32, i32
  }
  func.func @transform_3(%arg0: i32, %arg1: i32) -> (i32, i32, i32) {
    %c0_i32 = arith.constant 0 : i32
    %c0_i32_0 = arith.constant 0 : i32
    %c0_i32_1 = arith.constant 0 : i32
    return %arg0, %c0_i32, %c0_i32_0 : i32, i32, i32
  }
}

</mosaic_0001>

<llo_original>
// kernel: tpu_custom_call.1
$region0: #{tpu_custom_call.1}
  #allocation0 [shape = 'u32[]', space=smem, size = 0x4, offset = 0x4, fixed_abs, tag = 'smem constant byte address 0x4 - core index']
  #allocation1 [shape = 'u32[72,128]{1,0:T(1,128)}', space=vmem, size = 0x9000, scoped, tag = 'internal scratch']
  %s0 = inlined_call_operand.hbm [shape: f32[2,4,256], index: 0, kind: input, shape index: {}]
  %s1 = inlined_call_operand.vmem [shape: f32[4,1], index: 1, kind: input, shape index: {}]
  %s2 = inlined_call_operand.hbm [shape: f32[1,2,4], index: 2, kind: output, shape index: {0}]
  %s3 = inlined_call_operand.vmem [shape: f32[1,2,1], index: 3, kind: output, shape index: {1}]
  %4 = xla_tuple %s2, %s3
  %s5 = sld [smem:[#allocation0]]
  $region34: #{tpu_custom_call.1} parent=0
    _
  %s7 = ssub.s32 1, %s5
  %s8 = scalar_select 0, %s7, %s5
  $region1: #{tpu_custom_call.1} parent=0
    #allocation2 [shape = 'u8[8192]{0}', space=vmem, size = 0x2000, scoped, tag = 'input window, operand 0, single buffered']
    #allocation3 [shape = 's32[1]{0}', space=sflag, size = 0x4, scoped, tag = 'scoped memory for tpu_custom_call.1']
    #allocation4 [shape = 's32[1]{0}', space=sflag, size = 0x4, scoped, tag = 'scoped memory for tpu_custom_call.1']
    #allocation5 [shape = 'u8[1024]{0}', space=vmem, size = 0x400, scoped, tag = 'output window, operand 0, single buffered']
    %9 = vsyncpa [#allocation3], 0
    %10 = vsyncpa [#allocation4], 0
    // Predicated region
    $region2: #{tpu_custom_call.1} parent=1 // pred_check
      _
    $region3: #{tpu_custom_call.1} parent=1 // pred_check_branch
      %12 = sbr.rel (0) target = $region5
    $region4: #{tpu_custom_call.1} parent=1 // pred_region
      %s13 = sadd.s32 0, 0
      %s14 = smul.u32 2, %s13
      %16 = vsyncadd [#allocation3], 0
      %s17 = smul.addr %s14, 4
      %s18 = scalar_lea.hbm %s0, %s17
      %s19 = sshll.u32 %s18, 4
      %s20 = int_to_ptr.hbm [resolvable:$true] %s19
      %s21 = sshll.u32 [#allocation2], 4
      %s22 = int_to_ptr.vmem [resolvable:$true] %s21
      %27 = dma.hbm_to_vmem [thread:$0]  %s20, 256, %s22, [#allocation3], 128, 128, 8
    $region5: #{tpu_custom_call.1} parent=1 // pred_fallthru
      _
    // Predicated region
    $region6: #{tpu_custom_call.1} parent=1 // pred_check
      _
    $region7: #{tpu_custom_call.1} parent=1 // pred_check_branch
      %29 = sbr.rel (0) target = $region9
    $region8: #{tpu_custom_call.1} parent=1 // pred_region
      _
    $region9: #{tpu_custom_call.1} parent=1 // pred_fallthru
      _
    // Predicated region
    $region10: #{tpu_custom_call.1} parent=1 // pred_check
      _
    $region11: #{tpu_custom_call.1} parent=1 // pred_check_branch
      %31 = sbr.rel (0) target = $region13
    $region12: #{tpu_custom_call.1} parent=1 // pred_region
      %33 = dma.done [#allocation3], 256
    $region13: #{tpu_custom_call.1} parent=1 // pred_fallthru
      _
    %s34 = sadd.s32 0, 0
    %s35 = smul.u32 2, %s34
    %p36 = scmp.eq.s32.totalorder 0, 0
    // Predicated region
    $region14: #{tpu_custom_call.1} parent=1 // pred_check
      %p37 = pneg %p36
    $region15: #{tpu_custom_call.1} parent=1 // pred_check_branch
      %39 = sbr.rel (%p37) target = $region17
    $region16: #{tpu_custom_call.1} parent=1 // pred_region
      %vm40 = vcmask 25600
      %41 = vst.msk [vmem:[#allocation5] sm:$0x3] %vm40, 0.0
      %vm42 = vcmask 1024
      %43 = vst.msk [vmem:[%s3] sm:$0x3] %vm42, 0.0
    $region17: #{tpu_custom_call.1} parent=1 // pred_fallthru
      _
    %v44 = vld [vmem:[#allocation2] sm:$0xff]
    %v45 = vld [vmem:[#allocation2 + $0x8] sm:$0xff]
    %v46 = vld [vmem:[%s1] sm:$0xf]
    %48 = vset.pattern.permute.xlu0 0
    %49 = vperm.xlu0 %48, %v46
    %v50 = vpop.permute.xlu0 %49
    %v52 = vunpack.c.l.s4 839922192
    %v53 = vunpack.c.0.s8 %v52
    %v54 = vperm.slane %v50, %v53
    %v56 = vmul.f32 %v44, %v54
    %v57 = vmul.f32 %v45, %v54
    %60 = vst [vmem:[#allocation1] ss:$2 sm:$0xff] %v56
    %v61 = vld.sshfl [vmem:[#allocation1] sm:$0xff pattern:$0x75316420]
    %v62 = vld.sshfl [vmem:[#allocation1 + $0x8] sm:$0xff pattern:$0x75316420]
    %s63 = scalar_lea.vmem [#allocation1], 16
    %64 = vst [vmem:[%s63] ss:$2 sm:$0xff] %v57
    %v65 = vld.sshfl [vmem:[#allocation1 + $0x10] sm:$0xff pattern:$0x75316420]
    %v66 = vld.sshfl [vmem:[#allocation1 + $0x18] sm:$0xff pattern:$0x75316420]
    %vm71 = vcmask 1043456
    %v72 = vsel %vm71, %v61, 0.0
    %v73 = vrot.slane %v72, 4
    %v74 = vadd.f32 %v72, %v73
    %v75 = vrot.slane %v74, 2
    %v76 = vadd.f32 %v74, %v75
    %v77 = vrot.slane %v76, 1
    %v78 = vadd.f32 %v76, %v77
    %v79 = vsel %vm71, %v62, 0.0
    %v80 = vrot.slane %v79, 4
    %v81 = vadd.f32 %v79, %v80
    %v82 = vrot.slane %v81, 2
    %v83 = vadd.f32 %v81, %v82
    %v84 = vrot.slane %v83, 1
    %v85 = vadd.f32 %v83, %v84
    %v86 = vsel %vm71, %v65, 0.0
    %v87 = vrot.slane %v86, 4
    %v88 = vadd.f32 %v86, %v87
    %v89 = vrot.slane %v88, 2
    %v90 = vadd.f32 %v88, %v89
    %v91 = vrot.slane %v90, 1
    %v92 = vadd.f32 %v90, %v91
    %v93 = vsel %vm71, %v66, 0.0
    %v94 = vrot.slane %v93, 4
    %v95 = vadd.f32 %v93, %v94
    %v96 = vrot.slane %v95, 2
    %v97 = vadd.f32 %v95, %v96
    %v98 = vrot.slane %v97, 1
    %v99 = vadd.f32 %v97, %v98
    %v100 = vmax.f32 %v78, %v92
    %v101 = vmax.f32 %v85, %v99
    %v102 = vsub.f32 %v78, %v100
    %v103 = vsub.f32 %v85, %v101
    %v104 = vsub.f32 %v92, %v100
    %v105 = vsub.f32 %v99, %v101
    %v106 = vmul.f32 %v102, 1.442695
    %v107 = vpow.pop %v106
    %v108 = vmul.f32 %v103, 1.442695
    %v109 = vpow.pop %v108
    %v110 = vmul.f32 %v104, 1.442695
    %v111 = vpow.pop %v110
    %v112 = vmul.f32 %v105, 1.442695
    %v113 = vpow.pop %v112
    %v118 = vrot.slane %v111, 7
    %vm119 = vcmask 1041409
    %v120 = vsel %vm119, %v118, %v107
    %v121 = vrot.slane %v113, 7
    %v122 = vsel %vm119, %v121, %v109
    %vm125 = vcmask 1041408
    %v126 = vsel %vm125, %v120, 0.0
    %v127 = vrot.slane %v126, 4
    %v128 = vadd.f32 %v126, %v127
    %v129 = vrot.slane %v128, 2
    %v130 = vadd.f32 %v128, %v129
    %v131 = vrot.slane %v130, 1
    %v132 = vadd.f32 %v130, %v131
    %v133 = vsel %vm125, %v122, 0.0
    %v134 = vrot.slane %v133, 4
    %v135 = vadd.f32 %v133, %v134
    %v136 = vrot.slane %v135, 2
    %v137 = vadd.f32 %v135, %v136
    %v138 = vrot.slane %v137, 1
    %v139 = vadd.f32 %v137, %v138
    %v140 = vrcp.pop %v132
    %v141 = vrcp.pop %v139
    %v142 = vmul.f32 %v132, %v140
    %v143 = vmul.f32 %v139, %v141
    %v144 = vsub.f32 2.0, %v142
    %v145 = vsub.f32 2.0, %v143
    %v146 = vmul.f32 %v140, %v144
    %v147 = vmul.f32 %v141, %v145
    %v148 = vperm.slane %v146, 0
    %v149 = vperm.slane %v147, 0
    %v150 = vmul.f32 %v107, %v148
    %v151 = vmul.f32 %v109, %v149
    %v152 = vmul.f32 %v111, %v148
    %v153 = vmul.f32 %v113, %v149
    %v154 = vld [vmem:[#allocation5] sm:$0x3]
    %v155 = vperm.slane %v150, 0
    %v156 = vperm.slane %v151, 0
    %v157 = vperm.slane %v152, 0
    %v158 = vperm.slane %v153, 0
    %v163 = vrot.slane %v156, 4
    %v164 = vrot.slane %v158, 4
    %v165 = vsel %vm71, %v155, %v163
    %v166 = vsel %vm71, %v157, %v164
    %v169 = vmul.f32 %v44, %v165
    %v170 = vmul.f32 %v45, %v166
    %173 = vst [vmem:[#allocation1] ss:$2 sm:$0xff] %v169
    %v174 = vld.sshfl [vmem:[#allocation1] sm:$0xff pattern:$0x75316420]
    %v175 = vld.sshfl [vmem:[#allocation1 + $0x8] sm:$0xff pattern:$0x75316420]
    %s176 = scalar_lea.vmem [#allocation1], 16
    %177 = vst [vmem:[%s176] ss:$2 sm:$0xff] %v170
    %v178 = vld.sshfl [vmem:[#allocation1 + $0x10] sm:$0xff pattern:$0x75316420]
    %v179 = vld.sshfl [vmem:[#allocation1 + $0x18] sm:$0xff pattern:$0x75316420]
    %v184 = vsel %vm71, %v174, 0.0
    %v185 = vsel %vm71, %v175, 0.0
    %v186 = vadd.f32 %v184, %v185
    %187 = vadd.xlane.f32.xlu0 %v186
    %v188 = vpop.xlane.xlu0 %187
    %v189 = vsel %vm71, %v178, 0.0
    %v190 = vsel %vm71, %v179, 0.0
    %v191 = vadd.f32 %v189, %v190
    %192 = vadd.xlane.f32.xlu0 %v191
    %v193 = vpop.xlane.xlu0 %192
    %v196 = vlaneseq
    %v197 = vand.u32 %v196, 127
    %v198 = vperm.slane %v188, %v197
    %v199 = vperm.slane %v193, %v197
    %v200 = vsel %vm119, %v199, %v198
    %v202 = vadd.f32 %v154, %v200
    %vm203 = vcmask 25600
    %204 = vst.msk [vmem:[#allocation5] sm:$0x3] %vm203, %v202
    %v205 = vld [vmem:[%s3] sm:$0x3]
    %v210 = vrot.slane %v152, 7
    %v211 = vsel %vm119, %v210, %v150
    %v212 = vrot.slane %v153, 7
    %v213 = vsel %vm119, %v212, %v151
    %v216 = vsel %vm125, %v211, 0.0
    %v217 = vsel %vm125, %v213, 0.0
    %v218 = vadd.f32 %v216, %v217
    %219 = vadd.xlane.f32.xlu0 %v218
    %v220 = vpop.xlane.xlu0 %219
    %v221 = vadd.f32 %v205, %v220
    %vm222 = vcmask 1024
    %223 = vst.msk [vmem:[%s3] sm:$0x3] %vm222, %v221
    // Predicated region
    $region18: #{tpu_custom_call.1} parent=1 // pred_check
      _
    $region19: #{tpu_custom_call.1} parent=1 // pred_check_branch
      %225 = sbr.rel (0) target = $region21
    $region20: #{tpu_custom_call.1} parent=1 // pred_region
      %227 = vsyncadd [#allocation4], 0
      %s229 = sshll.u32 [#allocation5], 4
      %s230 = int_to_ptr.vmem [resolvable:$true] %s229
      %s231 = sshll.u32 %s2, 4
      %s232 = int_to_ptr.hbm [resolvable:$true] %s231
      %234 = dma.vmem_to_hbm [thread:$0]  %s230, 32, %s232, [#allocation4]
    $region21: #{tpu_custom_call.1} parent=1 // pred_fallthru
      _
    // Predicated region
    $region22: #{tpu_custom_call.1} parent=1 // pred_check
      _
    $region23: #{tpu_custom_call.1} parent=1 // pred_check_branch
      %236 = sbr.rel (0) target = $region25
    $region24: #{tpu_custom_call.1} parent=1 // pred_region
      _
    $region25: #{tpu_custom_call.1} parent=1 // pred_fallthru
      _
    // Predicated region
    $region26: #{tpu_custom_call.1} parent=1 // pred_check
      _
    $region27: #{tpu_custom_call.1} parent=1 // pred_check_branch
      %238 = sbr.rel (0) target = $region29
    $region28: #{tpu_custom_call.1} parent=1 // pred_region
      %240 = dma.done [#allocation4], 32
    $region29: #{tpu_custom_call.1} parent=1 // pred_fallthru
      _
    // Predicated region
    $region30: #{tpu_custom_call.1} parent=1 // pred_check
      _
    $region31: #{tpu_custom_call.1} parent=1 // pred_check_branch
      %242 = sbr.rel (0) target = $region33
    $region32: #{tpu_custom_call.1} parent=1 // pred_region
      _
    $region33: #{tpu_custom_call.1} parent=1 // pred_fallthru
      _
    %243 = vsyncpa [#allocation3], 1
    %244 = vsyncpa [#allocation4], 1

</llo_original>
